<compile_context>
chip_gen: v6e
topology: v6e:2x2x1
jax: 0.10.0
libtpu: 0.0.40
codegen_flags: <defaults>
</compile_context>

<pallas_src>
import functools

import jax
import jax.numpy as jnp
import numpy as np
from jax.experimental import pallas as pl
from jax.experimental.pallas import tpu as pltpu


def _bilinear_matrix_np(in_size: int, out_size: int) -> np.ndarray:
    """Row-stochastic (out_size, in_size) matrix reproducing PyTorch's
    F.interpolate(mode='bilinear', align_corners=False) along one axis."""
    scale = in_size / out_size
    i = np.arange(out_size, dtype=np.float64)
    src = np.maximum(scale * (i + 0.5) - 0.5, 0.0)          # half-pixel centers
    i0 = np.clip(np.floor(src).astype(np.int64), 0, in_size - 1)
    i1 = np.minimum(i0 + 1, in_size - 1)
    lam1 = src - i0
    lam0 = 1.0 - lam1
    W = np.zeros((out_size, in_size), dtype=np.float64)
    rows = np.arange(out_size)
    np.add.at(W, (rows, i0), lam0)
    np.add.at(W, (rows, i1), lam1)
    return W


@functools.lru_cache(maxsize=None)
def _fused_weight(H: int, W: int, stride: int, pack: int, dtype_name: str):
    """(pack*H*W, pack*Ho*Wo) block-diagonal fused bilinear weight (cached device array)."""
    Ho, Wo = H // stride, W // stride
    wh = _bilinear_matrix_np(H, Ho)                          # (Ho, H)
    ww = _bilinear_matrix_np(W, Wo)                          # (Wo, W)
    # Wk[(i*Wo+j), (h*W+w)] = wh[i,h] * ww[j,w]; store transposed: (H*W, Ho*Wo)
    kt = (wh[:, None, :, None] * ww[None, :, None, :]).reshape(Ho * Wo, H * W).T
    if pack > 1:
        blk = np.zeros((pack * H * W, pack * Ho * Wo), dtype=kt.dtype)
        for p in range(pack):
            blk[p * H * W:(p + 1) * H * W, p * Ho * Wo:(p + 1) * Ho * Wo] = kt
        kt = blk
    # Values are {0, 0.25, 0.5, 1} for integer strides -> exact in bf16 as well as f32.
    return jnp.asarray(kt.astype(np.float32), dtype=jnp.dtype(dtype_name))


def _interp_kernel(x_ref, wt_ref, o_ref):
    # x_ref:  (TB, P*H*W)        batch of flattened (packed) planes
    # wt_ref: (P*H*W, P*Ho*Wo)   resident block-diagonal fused bilinear weight
    # o_ref:  (TB, P*Ho*Wo)
    x = x_ref[...]
    w = wt_ref[...]
    if x.dtype != w.dtype:            # only for non-(f32/bf16) inputs; cast rides in-kernel
        x = x.astype(w.dtype)
    o_ref[...] = jnp.dot(x, w, preferred_element_type=jnp.float32).astype(o_ref.dtype)


def interpolate(x: jnp.ndarray, stride: int) -> jnp.ndarray:
    """Equivalent of Interpolate(stride).forward(x) for NCHW input."""
    assert x.ndim == 4
    N, C, H, W = x.shape
    assert H % stride == 0 and W % stride == 0
    Ho, Wo = H // stride, W // stride
    NC, HW, HoWo = N * C, H * W, Ho * Wo

    # ---- lane-dense packing: fold P consecutive planes into one GEMM row so the output
    # last dim (P*Ho*Wo) reaches >= 128 lanes (unmasked stores, full MXU N occupancy).
    P = 1
    if HoWo < 128 and NC > 1:
        target = -(-128 // HoWo)
        for p in range(target, min(NC, 2 * target) + 1):
            if NC % p == 0 and (p * HW) * (p * HoWo) * 4 <= (8 << 20):
                P = p
                break
    rows = NC // P
    Kdim = P * HW
    Ndim = P * HoWo

    compute_dtype = jnp.bfloat16 if x.dtype == jnp.bfloat16 else jnp.float32
    wt = _fused_weight(H, W, stride, P, jnp.dtype(compute_dtype).name)
    # TODO(synk): for large spatial sizes where the kron weight stops fitting VMEM
    # (H*W * Ho*Wo * itemsize >> a few MiB), switch to a two-stage separable GEMM
    # (x @ Ww^T, then Wh @ .) instead of the fused kron.

    x_packed = x.reshape(rows, Kdim)          # free contiguous reshape, no dtype cast

    # ---- per-generation VMEM budget --------------------------------------------------
    try:
        vmem_cap = int(pltpu.get_tpu_info().vmem_capacity_bytes)
    except Exception:
        vmem_cap = 64 * 1024 * 1024           # conservative (v7x-sized) if query fails
    vmem_limit = max(32 * 1024 * 1024,
                     min(int(vmem_cap * 0.78), 100 * 1024 * 1024))  # ~50 MiB v7x, ~100 MiB v5e/v6e

    itemsize = jnp.dtype(x.dtype).itemsize
    sublane = {4: 8, 2: 16, 1: 32}.get(itemsize, 8)
    row_in_b = Kdim * itemsize
    row_out_b = Ndim * itemsize
    per_row_vmem = 2 * (row_in_b + row_out_b)               # double-buffered in + out blocks
    weight_vmem = int(wt.size) * wt.dtype.itemsize          # single-buffered resident weight
    io_budget = max(vmem_limit - weight_vmem - (4 << 20), sublane * per_row_vmem)
    tb_cap = max(sublane, (io_budget // per_row_vmem) // sublane * sublane)

    # ---- plane-batch TB: ~2 MiB of HBM traffic per step, even near-equal split -------
    bytes_total = rows * (row_in_b + row_out_b)
    n_steps = max(2 if bytes_total >= (1 << 20) else 1,
                  -(-bytes_total // (2 << 20)))
    n_steps = min(n_steps, max(1, rows // sublane))
    if n_steps > 1 and n_steps % 2:
        n_steps += 1                          # even #steps -> balanced split on v7x megacore
    if rows <= sublane:
        TB = rows                             # full dim (exempt from the sublane multiple rule)
    else:
        TB = -(-rows // n_steps)
        TB = -(-TB // sublane) * sublane      # dtype-dependent sublane multiple (8/16/32)
        TB = max(sublane, min(TB, tb_cap, 2048))
        if TB > rows:
            TB = rows
    grid = (pl.cdiv(rows, TB),)

    def _call(weight_spec):
        return pl.pallas_call(
            _interp_kernel,
            out_shape=jax.ShapeDtypeStruct((rows, Ndim), x.dtype),
            grid_spec=pltpu.PrefetchScalarGridSpec(
                num_scalar_prefetch=0,
                grid=grid,
                in_specs=[pl.BlockSpec((TB, Kdim), lambda i: (i, 0)), weight_spec],
                out_specs=pl.BlockSpec((TB, Ndim), lambda i: (i, 0)),
            ),
            compiler_params=pltpu.CompilerParams(
                dimension_semantics=("parallel",),
                vmem_limit_bytes=vmem_limit,
            ),
        )(x_packed, wt)

    try:
        # Resident weight (constant index_map) -> single-buffer it: halves its VMEM cost.
        out_flat = jax.block_until_ready(
            _call(pl.BlockSpec((Kdim, Ndim), lambda i: (0, 0),
                               pipeline_mode=pl.Buffered(1))))
    except Exception:
        # Fallback if this Pallas build rejects single-buffered pipelined inputs
        # (weight is small for the supported shapes, so double-buffering still fits).
        out_flat = _call(pl.BlockSpec((Kdim, Ndim), lambda i: (0, 0)))

    return out_flat.reshape(N, C, Ho, Wo)


def _reference(x: jnp.ndarray, stride: int) -> jnp.ndarray:
    """Pure-JAX gather-based reference of PyTorch bilinear (align_corners=False)."""
    N, C, H, W = x.shape
    Ho, Wo = H // stride, W // stride

    def axis_idx(in_size, out_size):
        scale = in_size / out_size
        i = jnp.arange(out_size, dtype=jnp.float32)
        src = jnp.maximum(scale * (i + 0.5) - 0.5, 0.0)
        i0 = jnp.clip(jnp.floor(src).astype(jnp.int32), 0, in_size - 1)
        i1 = jnp.minimum(i0 + 1, in_size - 1)
        lam1 = src - i0.astype(jnp.float32)
        return i0, i1, lam1

    h0, h1, lh = axis_idx(H, Ho)
    w0, w1, lw = axis_idx(W, Wo)
    xf = x.astype(jnp.float32)
    top = xf[:, :, h0, :] * (1 - lh)[None, None, :, None] + xf[:, :, h1, :] * lh[None, None, :, None]
    out = top[:, :, :, w0] * (1 - lw)[None, None, None, :] + top[:, :, :, w1] * lw[None, None, None, :]
    return out.astype(x.dtype)


if __name__ == "__main__":
    key = jax.random.PRNGKey(0)
    stride = 2

    # 1) Small shape consistent with the module.
    N, C, H, W = 2, 4, 16, 16
    x = jax.random.normal(key, (N, C, H, W), dtype=jnp.float32)
    out = jax.block_until_ready(interpolate(x, stride))
    ref = _reference(x, stride)
    assert out.shape == (N, C, H // stride, W // stride)
    assert jnp.allclose(out, ref, atol=1e-5, rtol=1e-5)

    # 2) Enough planes to exercise the plane-packing + TB/grid policy.
    x2 = jax.random.normal(jax.random.PRNGKey(1), (5, 120, H, W), dtype=jnp.float32)
    out2 = jax.block_until_ready(interpolate(x2, stride))
    ref2 = _reference(x2, stride)
    assert out2.shape == (5, 120, H // stride, W // stride)
    assert jnp.allclose(out2, ref2, atol=1e-5, rtol=1e-5)

    # 3) Native bf16 MXU path (kron weights {0, 0.25, 0.5, 1} are exact in bf16).
    x3 = jax.random.normal(jax.random.PRNGKey(2), (N, C, H, W), dtype=jnp.bfloat16)
    out3 = jax.block_until_ready(interpolate(x3, stride))
    ref3 = _reference(x3, stride)
    assert out3.shape == (N, C, H // stride, W // stride)
    assert jnp.allclose(out3.astype(jnp.float32), ref3.astype(jnp.float32),
                        atol=2e-2, rtol=2e-2)

    print("KERNEL_OK")
</pallas_src>

<mosaic_0001>
module attributes {stable_mosaic.version = 11 : i64} {
  func.func @_interp_kernel(%arg0: i32, %arg1: memref<4x512xf32, #tpu.memory_space<vmem>>, %arg2: memref<512x128xf32, #tpu.memory_space<vmem>>, %arg3: memref<4x128xf32, #tpu.memory_space<vmem>>) attributes {dimension_semantics = [#tpu.dimension_semantics<parallel>], iteration_bounds = array<i64: 1>, scalar_prefetch = 0 : i64, scratch_operands = 0 : i64, tpu.core_type = #tpu.core_type<tc>, window_params = [{transform_indices = @transform_0, window_bounds = array<i64: 4, 512>}, {pipeline_mode = #tpu.pipeline_mode<synchronous>, transform_indices = @transform_1, window_bounds = array<i64: 512, 128>}, {transform_indices = @transform_2, window_bounds = array<i64: 4, 128>}]} {
    %c0 = arith.constant 0 : index
    %c0_0 = arith.constant 0 : index
    %0 = vector.load %arg1[%c0, %c0_0] : memref<4x512xf32, #tpu.memory_space<vmem>>, vector<4x512xf32>
    %c0_1 = arith.constant 0 : index
    %c0_2 = arith.constant 0 : index
    %1 = vector.load %arg2[%c0_1, %c0_2] : memref<512x128xf32, #tpu.memory_space<vmem>>, vector<512x128xf32>
    %cst = arith.constant dense<0.000000e+00> : vector<4x128xf32>
    %2 = tpu.matmul %0, %1, %cst {dimension_numbers = #tpu.dot_dimension_numbers<[1], [0], [0], [1], [0, 0, 1, 1], [], []>} : vector<4x512xf32>, vector<512x128xf32>, vector<4x128xf32> -> vector<4x128xf32>
    %c0_3 = arith.constant 0 : index
    %c0_4 = arith.constant 0 : index
    %3 = vector.load %arg3[%c0_3, %c0_4] : memref<4x128xf32, #tpu.memory_space<vmem>>, vector<4x128xf32>
    tpu.vector_store %arg3[%c0_3, %c0_4], %2 {strides = array<i32>} : memref<4x128xf32, #tpu.memory_space<vmem>>, vector<4x128xf32>,
    return
  }
  func.func @transform_0(%arg0: i32) -> (i32, i32) {
    %c0_i32 = arith.constant 0 : i32
    %c0_i32_0 = arith.constant 0 : i32
    return %arg0, %c0_i32 : i32, i32
  }
  func.func @transform_1(%arg0: i32) -> (i32, i32) {
    %c0_i32 = arith.constant 0 : i32
    %c0_i32_0 = arith.constant 0 : i32
    %c0_i32_1 = arith.constant 0 : i32
    return %c0_i32, %c0_i32_0 : i32, i32
  }
  func.func @transform_2(%arg0: i32) -> (i32, i32) {
    %c0_i32 = arith.constant 0 : i32
    %c0_i32_0 = arith.constant 0 : i32
    return %arg0, %c0_i32 : i32, i32
  }
}

module attributes {stable_mosaic.version = 11 : i64} {
  func.func @_interp_kernel(%arg0: i32, %arg1: memref<4x512xf32, #tpu.memory_space<vmem>>, %arg2: memref<512x128xf32, #tpu.memory_space<vmem>>, %arg3: memref<4x128xf32, #tpu.memory_space<vmem>>) attributes {dimension_semantics = [#tpu.dimension_semantics<parallel>], iteration_bounds = array<i64: 1>, scalar_prefetch = 0 : i64, scratch_operands = 0 : i64, tpu.core_type = #tpu.core_type<tc>, window_params = [{transform_indices = @transform_0, window_bounds = array<i64: 4, 512>}, {pipeline_mode = #tpu.pipeline_mode<synchronous>, transform_indices = @transform_1, window_bounds = array<i64: 512, 128>}, {transform_indices = @transform_2, window_bounds = array<i64: 4, 128>}]} {
    %c0 = arith.constant 0 : index
    %c0_0 = arith.constant 0 : index
    %0 = vector.load %arg1[%c0, %c0_0] : memref<4x512xf32, #tpu.memory_space<vmem>>, vector<4x512xf32>
    %c0_1 = arith.constant 0 : index
    %c0_2 = arith.constant 0 : index
    %1 = vector.load %arg2[%c0_1, %c0_2] : memref<512x128xf32, #tpu.memory_space<vmem>>, vector<512x128xf32>
    %cst = arith.constant dense<0.000000e+00> : vector<4x128xf32>
    %2 = tpu.matmul %0, %1, %cst {dimension_numbers = #tpu.dot_dimension_numbers<[1], [0], [0], [1], [0, 0, 1, 1], [], []>} : vector<4x512xf32>, vector<512x128xf32>, vector<4x128xf32> -> vector<4x128xf32>
    %c0_3 = arith.constant 0 : index
    %c0_4 = arith.constant 0 : index
    %3 = vector.load %arg3[%c0_3, %c0_4] : memref<4x128xf32, #tpu.memory_space<vmem>>, vector<4x128xf32>
    tpu.vector_store %arg3[%c0_3, %c0_4], %2 {strides = array<i32>} : memref<4x128xf32, #tpu.memory_space<vmem>>, vector<4x128xf32>,
    return
  }
  func.func @transform_0(%arg0: i32) -> (i32, i32) {
    %c0_i32 = arith.constant 0 : i32
    %c0_i32_0 = arith.constant 0 : i32
    return %arg0, %c0_i32 : i32, i32
  }
  func.func @transform_1(%arg0: i32) -> (i32, i32) {
    %c0_i32 = arith.constant 0 : i32
    %c0_i32_0 = arith.constant 0 : i32
    %c0_i32_1 = arith.constant 0 : i32
    return %c0_i32, %c0_i32_0 : i32, i32
  }
  func.func @transform_2(%arg0: i32) -> (i32, i32) {
    %c0_i32 = arith.constant 0 : i32
    %c0_i32_0 = arith.constant 0 : i32
    return %arg0, %c0_i32 : i32, i32
  }
}

</mosaic_0001>

<llo_original>
// kernel: tpu_custom_call.1
$region0: #{tpu_custom_call.1}
  #allocation0 [shape = 'u32[]', space=smem, size = 0x4, offset = 0x4, fixed_abs, tag = 'smem constant byte address 0x4 - core index']
  #allocation1 [shape = 'u32[144,128]{1,0:T(1,128)}', space=vmem, size = 0x12000, scoped, tag = 'internal scratch']
  %s0 = inlined_call_operand.hbm [shape: f32[4,512], index: 0, kind: input, shape index: {}]
  %s1 = inlined_call_operand.hbm [shape: f32[512,128], index: 1, kind: input, shape index: {}]
  %s2 = inlined_call_operand.hbm [shape: f32[4,128], index: 2, kind: output, shape index: {}]
  %s3 = sld [smem:[#allocation0]]
  $region26: #{tpu_custom_call.1} parent=0
    _
  %s5 = ssub.s32 1, %s3
  %s6 = scalar_select 0, %s5, %s3
  $region1: #{tpu_custom_call.1} parent=0
    #allocation2 [shape = 'u8[8192]{0}', space=vmem, size = 0x2000, scoped, tag = 'input window, operand 0, single buffered']
    #allocation3 [shape = 's32[1]{0}', space=sflag, size = 0x4, scoped, tag = 'scoped memory for tpu_custom_call.1']
    #allocation4 [shape = 's32[1]{0}', space=sflag, size = 0x4, scoped, tag = 'scoped memory for tpu_custom_call.1']
    #allocation5 [shape = 'u8[262144]{0}', space=vmem, size = 0x40000, scoped, tag = 'input window, operand 1, single buffered']
    #allocation6 [shape = 's32[1]{0}', space=sflag, size = 0x4, scoped, tag = 'scoped memory for tpu_custom_call.1']
    #allocation7 [shape = 'u8[2048]{0}', space=vmem, size = 0x800, scoped, tag = 'output window, operand 0, single buffered']
    %7 = vsyncpa [#allocation3], 0
    %8 = vsyncpa [#allocation6], 0
    %9 = vsyncpa [#allocation4], 0
    // Predicated region
    $region2: #{tpu_custom_call.1} parent=1 // pred_check
      _
    $region3: #{tpu_custom_call.1} parent=1 // pred_check_branch
      %11 = sbr.rel (0) target = $region5
    $region4: #{tpu_custom_call.1} parent=1 // pred_region
      %s13 = ssub.s32 256, 256
      %14 = vsyncadd [#allocation3], %s13
      %s16 = sshll.u32 [#allocation2], 4
      %s17 = int_to_ptr.vmem [resolvable:$true] %s16
      %19 = dma.hbm_to_vmem [thread:$0]  %s0, 256, %s17, [#allocation3]
    $region5: #{tpu_custom_call.1} parent=1 // pred_fallthru
      _
    // Predicated region
    $region6: #{tpu_custom_call.1} parent=1 // pred_check
      _
    $region7: #{tpu_custom_call.1} parent=1 // pred_check_branch
      %21 = sbr.rel (0) target = $region9
    $region8: #{tpu_custom_call.1} parent=1 // pred_region
      %s23 = ssub.s32 8192, 8192
      %24 = vsyncadd [#allocation6], %s23
      %s25 = sshll.u32 [#allocation5], 4
      %s26 = int_to_ptr.vmem [resolvable:$true] %s25
      %31 = dma.hbm_to_vmem [thread:$0]  %s1, 8192, %s26, [#allocation6], 128, 128, 8
    $region9: #{tpu_custom_call.1} parent=1 // pred_fallthru
      _
    // Predicated region
    $region10: #{tpu_custom_call.1} parent=1 // pred_check
      _
    $region11: #{tpu_custom_call.1} parent=1 // pred_check_branch
      %33 = sbr.rel (0) target = $region13
    $region12: #{tpu_custom_call.1} parent=1 // pred_region
      %34 = dma.done [#allocation3], 256
    $region13: #{tpu_custom_call.1} parent=1 // pred_fallthru
      _
    // Predicated region
    $region14: #{tpu_custom_call.1} parent=1 // pred_check
      _
    $region15: #{tpu_custom_call.1} parent=1 // pred_check_branch
      %36 = sbr.rel (0) target = $region17
    $region16: #{tpu_custom_call.1} parent=1 // pred_region
      %37 = dma.done [#allocation6], 8192
    $region17: #{tpu_custom_call.1} parent=1 // pred_fallthru
      _
    %v38 = vld [vmem:[#allocation2] sm:$0xff]
    %v39 = vld [vmem:[#allocation2 + $0x8] sm:$0xff]
    %v40 = vld [vmem:[#allocation5] sm:$0xff]
    %v41 = vld [vmem:[#allocation5 + $0x8] sm:$0xff]
    %v42 = vld [vmem:[#allocation5 + $0x10] sm:$0xff]
    %v43 = vld [vmem:[#allocation5 + $0x18] sm:$0xff]
    %v44 = vld [vmem:[#allocation5 + $0x20] sm:$0xff]
    %v45 = vld [vmem:[#allocation5 + $0x28] sm:$0xff]
    %v46 = vld [vmem:[#allocation5 + $0x30] sm:$0xff]
    %v47 = vld [vmem:[#allocation5 + $0x38] sm:$0xff]
    %v48 = vld [vmem:[#allocation5 + $0x40] sm:$0xff]
    %v49 = vld [vmem:[#allocation5 + $0x48] sm:$0xff]
    %v50 = vld [vmem:[#allocation5 + $0x50] sm:$0xff]
    %v51 = vld [vmem:[#allocation5 + $0x58] sm:$0xff]
    %v52 = vld [vmem:[#allocation5 + $0x60] sm:$0xff]
    %v53 = vld [vmem:[#allocation5 + $0x68] sm:$0xff]
    %v54 = vld [vmem:[#allocation5 + $0x70] sm:$0xff]
    %v55 = vld [vmem:[#allocation5 + $0x78] sm:$0xff]
    %v56 = vld [vmem:[#allocation5 + $0x80] sm:$0xff]
    %v57 = vld [vmem:[#allocation5 + $0x88] sm:$0xff]
    %v58 = vld [vmem:[#allocation5 + $0x90] sm:$0xff]
    %v59 = vld [vmem:[#allocation5 + $0x98] sm:$0xff]
    %v60 = vld [vmem:[#allocation5 + $0xa0] sm:$0xff]
    %v61 = vld [vmem:[#allocation5 + $0xa8] sm:$0xff]
    %v62 = vld [vmem:[#allocation5 + $0xb0] sm:$0xff]
    %v63 = vld [vmem:[#allocation5 + $0xb8] sm:$0xff]
    %v64 = vld [vmem:[#allocation5 + $0xc0] sm:$0xff]
    %v65 = vld [vmem:[#allocation5 + $0xc8] sm:$0xff]
    %v66 = vld [vmem:[#allocation5 + $0xd0] sm:$0xff]
    %v67 = vld [vmem:[#allocation5 + $0xd8] sm:$0xff]
    %v68 = vld [vmem:[#allocation5 + $0xe0] sm:$0xff]
    %v69 = vld [vmem:[#allocation5 + $0xe8] sm:$0xff]
    %v70 = vld [vmem:[#allocation5 + $0xf0] sm:$0xff]
    %v71 = vld [vmem:[#allocation5 + $0xf8] sm:$0xff]
    %v72 = vld [vmem:[#allocation5 + $0x100] sm:$0xff]
    %v73 = vld [vmem:[#allocation5 + $0x108] sm:$0xff]
    %v74 = vld [vmem:[#allocation5 + $0x110] sm:$0xff]
    %v75 = vld [vmem:[#allocation5 + $0x118] sm:$0xff]
    %v76 = vld [vmem:[#allocation5 + $0x120] sm:$0xff]
    %v77 = vld [vmem:[#allocation5 + $0x128] sm:$0xff]
    %v78 = vld [vmem:[#allocation5 + $0x130] sm:$0xff]
    %v79 = vld [vmem:[#allocation5 + $0x138] sm:$0xff]
    %v80 = vld [vmem:[#allocation5 + $0x140] sm:$0xff]
    %v81 = vld [vmem:[#allocation5 + $0x148] sm:$0xff]
    %v82 = vld [vmem:[#allocation5 + $0x150] sm:$0xff]
    %v83 = vld [vmem:[#allocation5 + $0x158] sm:$0xff]
    %v84 = vld [vmem:[#allocation5 + $0x160] sm:$0xff]
    %v85 = vld [vmem:[#allocation5 + $0x168] sm:$0xff]
    %v86 = vld [vmem:[#allocation5 + $0x170] sm:$0xff]
    %v87 = vld [vmem:[#allocation5 + $0x178] sm:$0xff]
    %v88 = vld [vmem:[#allocation5 + $0x180] sm:$0xff]
    %v89 = vld [vmem:[#allocation5 + $0x188] sm:$0xff]
    %v90 = vld [vmem:[#allocation5 + $0x190] sm:$0xff]
    %v91 = vld [vmem:[#allocation5 + $0x198] sm:$0xff]
    %v92 = vld [vmem:[#allocation5 + $0x1a0] sm:$0xff]
    %v93 = vld [vmem:[#allocation5 + $0x1a8] sm:$0xff]
    %v94 = vld [vmem:[#allocation5 + $0x1b0] sm:$0xff]
    %v95 = vld [vmem:[#allocation5 + $0x1b8] sm:$0xff]
    %v96 = vld [vmem:[#allocation5 + $0x1c0] sm:$0xff]
    %v97 = vld [vmem:[#allocation5 + $0x1c8] sm:$0xff]
    %v98 = vld [vmem:[#allocation5 + $0x1d0] sm:$0xff]
    %v99 = vld [vmem:[#allocation5 + $0x1d8] sm:$0xff]
    %v100 = vld [vmem:[#allocation5 + $0x1e0] sm:$0xff]
    %v101 = vld [vmem:[#allocation5 + $0x1e8] sm:$0xff]
    %v102 = vld [vmem:[#allocation5 + $0x1f0] sm:$0xff]
    %v103 = vld [vmem:[#allocation5 + $0x1f8] sm:$0xff]
    %v106 = vcombine.high %v38, %v38
    %v107 = vcombine.high %v39, %v39
    %110 = vmatprep.subr.mxu0 0.0
    %111 = vmatpush1.msra.mxu0 %v55
    %112 = vmatprep.subr.mxu0 0.0
    %113 = vmatpush1.msra.mxu0 %v54
    %114 = vmatprep.subr.mxu0 0.0
    %115 = vmatpush1.msra.mxu0 %v53
    %116 = vmatprep.subr.mxu0 0.0
    %117 = vmatpush1.msra.mxu0 %v52
    %118 = vmatprep.subr.mxu0 0.0
    %119 = vmatpush1.msra.mxu0 %v51
    %120 = vmatprep.subr.mxu0 0.0
    %121 = vmatpush1.msra.mxu0 %v50
    %122 = vmatprep.subr.mxu0 0.0
    %123 = vmatpush1.msra.mxu0 %v49
    %124 = vmatprep.subr.mxu0 0.0
    %125 = vmatpush1.msra.mxu0 %v48
    %126 = vmatprep.subr.mxu0 0.0
    %127 = vmatpush1.msra.mxu0 %v47
    %128 = vmatprep.subr.mxu0 0.0
    %129 = vmatpush1.msra.mxu0 %v46
    %130 = vmatprep.subr.mxu0 0.0
    %131 = vmatpush1.msra.mxu0 %v45
    %132 = vmatprep.subr.mxu0 0.0
    %133 = vmatpush1.msra.mxu0 %v44
    %134 = vmatprep.subr.mxu0 0.0
    %135 = vmatpush1.msra.mxu0 %v43
    %136 = vmatprep.subr.mxu0 0.0
    %137 = vmatpush1.msra.mxu0 %v42
    %138 = vmatprep.subr.mxu0 0.0
    %139 = vmatpush1.msra.mxu0 %v41
    %140 = vmatprep.subr.mxu0 0.0
    %141 = vmatpush1.msra.mxu0 %v40
    %142 = vmatprep.subr.mxu0 0.0
    %143 = vmatpush2.msra.mxu0 %v71
    %144 = vmatprep.subr.mxu0 0.0
    %145 = vmatpush2.msra.mxu0 %v70
    %146 = vmatprep.subr.mxu0 0.0
    %147 = vmatpush2.msra.mxu0 %v69
    %148 = vmatprep.subr.mxu0 0.0
    %149 = vmatpush2.msra.mxu0 %v68
    %150 = vmatprep.subr.mxu0 0.0
    %151 = vmatpush2.msra.mxu0 %v67
    %152 = vmatprep.subr.mxu0 0.0
    %153 = vmatpush2.msra.mxu0 %v66
    %154 = vmatprep.subr.mxu0 0.0
    %155 = vmatpush2.msra.mxu0 %v65
    %156 = vmatprep.subr.mxu0 0.0
    %157 = vmatpush2.msra.mxu0 %v64
    %158 = vmatprep.subr.mxu0 0.0
    %159 = vmatpush2.msra.mxu0 %v63
    %160 = vmatprep.subr.mxu0 0.0
    %161 = vmatpush2.msra.mxu0 %v62
    %162 = vmatprep.subr.mxu0 0.0
    %163 = vmatpush2.msra.mxu0 %v61
    %164 = vmatprep.subr.mxu0 0.0
    %165 = vmatpush2.msra.mxu0 %v60
    %166 = vmatprep.subr.mxu0 0.0
    %167 = vmatpush2.msra.mxu0 %v59
    %168 = vmatprep.subr.mxu0 0.0
    %169 = vmatpush2.msra.mxu0 %v58
    %170 = vmatprep.subr.mxu0 0.0
    %171 = vmatpush2.msra.mxu0 %v57
    %172 = vmatprep.subr.mxu0 0.0
    %173 = vmatpush2.msra.mxu0 %v56
    %174 = vmatprep.mubr.f32.mxu0 %v106
    %175 = vmatmul.mubr.f32.gmra.mxu0 %v38
    %v176 = vpop.f32.mrf.mxu0
    %v177 = vadd.f32 0.0, %v176
    %v178 = vpop.f32.mrf.mxu0
    %179 = vdwg.mxu0
    %180 = vmatprep.subr.mxu0 0.0
    %181 = vmatpush1.msra.mxu0 %v87
    %182 = vmatprep.subr.mxu0 0.0
    %183 = vmatpush1.msra.mxu0 %v86
    %184 = vmatprep.subr.mxu0 0.0
    %185 = vmatpush1.msra.mxu0 %v85
    %186 = vmatprep.subr.mxu0 0.0
    %187 = vmatpush1.msra.mxu0 %v84
    %188 = vmatprep.subr.mxu0 0.0
    %189 = vmatpush1.msra.mxu0 %v83
    %190 = vmatprep.subr.mxu0 0.0
    %191 = vmatpush1.msra.mxu0 %v82
    %192 = vmatprep.subr.mxu0 0.0
    %193 = vmatpush1.msra.mxu0 %v81
    %194 = vmatprep.subr.mxu0 0.0
    %195 = vmatpush1.msra.mxu0 %v80
    %196 = vmatprep.subr.mxu0 0.0
    %197 = vmatpush1.msra.mxu0 %v79
    %198 = vmatprep.subr.mxu0 0.0
    %199 = vmatpush1.msra.mxu0 %v78
    %200 = vmatprep.subr.mxu0 0.0
    %201 = vmatpush1.msra.mxu0 %v77
    %202 = vmatprep.subr.mxu0 0.0
    %203 = vmatpush1.msra.mxu0 %v76
    %204 = vmatprep.subr.mxu0 0.0
    %205 = vmatpush1.msra.mxu0 %v75
    %206 = vmatprep.subr.mxu0 0.0
    %207 = vmatpush1.msra.mxu0 %v74
    %208 = vmatprep.subr.mxu0 0.0
    %209 = vmatpush1.msra.mxu0 %v73
    %210 = vmatprep.subr.mxu0 0.0
    %211 = vmatpush1.msra.mxu0 %v72
    %212 = vmatprep.subr.mxu0 0.0
    %213 = vmatpush2.msra.mxu0 %v103
    %214 = vmatprep.subr.mxu0 0.0
    %215 = vmatpush2.msra.mxu0 %v102
    %216 = vmatprep.subr.mxu0 0.0
    %217 = vmatpush2.msra.mxu0 %v101
    %218 = vmatprep.subr.mxu0 0.0
    %219 = vmatpush2.msra.mxu0 %v100
    %220 = vmatprep.subr.mxu0 0.0
    %221 = vmatpush2.msra.mxu0 %v99
    %222 = vmatprep.subr.mxu0 0.0
    %223 = vmatpush2.msra.mxu0 %v98
    %224 = vmatprep.subr.mxu0 0.0
    %225 = vmatpush2.msra.mxu0 %v97
    %226 = vmatprep.subr.mxu0 0.0
    %227 = vmatpush2.msra.mxu0 %v96
    %228 = vmatprep.subr.mxu0 0.0
    %229 = vmatpush2.msra.mxu0 %v95
    %230 = vmatprep.subr.mxu0 0.0
    %231 = vmatpush2.msra.mxu0 %v94
    %232 = vmatprep.subr.mxu0 0.0
    %233 = vmatpush2.msra.mxu0 %v93
    %234 = vmatprep.subr.mxu0 0.0
    %235 = vmatpush2.msra.mxu0 %v92
    %236 = vmatprep.subr.mxu0 0.0
    %237 = vmatpush2.msra.mxu0 %v91
    %238 = vmatprep.subr.mxu0 0.0
    %239 = vmatpush2.msra.mxu0 %v90
    %240 = vmatprep.subr.mxu0 0.0
    %241 = vmatpush2.msra.mxu0 %v89
    %242 = vmatprep.subr.mxu0 0.0
    %243 = vmatpush2.msra.mxu0 %v88
    %244 = vmatprep.mubr.f32.mxu0 %v107
    %245 = vmatmul.mubr.f32.gmra.mxu0 %v39
    %v246 = vpop.f32.mrf.mxu0
    %v247 = vadd.f32 %v177, %v246
    %v248 = vpop.f32.mrf.mxu0
    %249 = vdwg.mxu0
    %250 = vst [vmem:[#allocation7] sm:$0xf] %v247
    // Predicated region
    $region18: #{tpu_custom_call.1} parent=1 // pred_check
      _
    $region19: #{tpu_custom_call.1} parent=1 // pred_check_branch
      %252 = sbr.rel (0) target = $region21
    $region20: #{tpu_custom_call.1} parent=1 // pred_region
      %s254 = ssub.s32 64, 64
      %255 = vsyncadd [#allocation4], %s254
      %s257 = sshll.u32 [#allocation7], 4
      %s258 = int_to_ptr.vmem [resolvable:$true] %s257
      %260 = dma.vmem_to_hbm [thread:$0]  %s258, 64, %s2, [#allocation4]
    $region21: #{tpu_custom_call.1} parent=1 // pred_fallthru
      _
    // Predicated region
    $region22: #{tpu_custom_call.1} parent=1 // pred_check
      _
    $region23: #{tpu_custom_call.1} parent=1 // pred_check_branch
      %262 = sbr.rel (0) target = $region25
    $region24: #{tpu_custom_call.1} parent=1 // pred_region
      %263 = dma.done [#allocation4], 64
    $region25: #{tpu_custom_call.1} parent=1 // pred_fallthru
      _
    %264 = vsyncpa [#allocation3], 1
    %265 = vsyncpa [#allocation6], 1
    %266 = vsyncpa [#allocation4], 1

// kernel: tpu_custom_call.1
$region0: #{tpu_custom_call.1}
  #allocation0 [shape = 'u32[]', space=smem, size = 0x4, offset = 0x4, fixed_abs, tag = 'smem constant byte address 0x4 - core index']
  #allocation1 [shape = 'u32[144,128]{1,0:T(1,128)}', space=vmem, size = 0x12000, scoped, tag = 'internal scratch']
  %s0 = inlined_call_operand.hbm [shape: f32[4,512], index: 0, kind: input, shape index: {}]
  %s1 = inlined_call_operand.hbm [shape: f32[512,128], index: 1, kind: input, shape index: {}]
  %s2 = inlined_call_operand.hbm [shape: f32[4,128], index: 2, kind: output, shape index: {}]
  %s3 = sld [smem:[#allocation0]]
  $region26: #{tpu_custom_call.1} parent=0
    _
  %s5 = ssub.s32 1, %s3
  %s6 = scalar_select 0, %s5, %s3
  $region1: #{tpu_custom_call.1} parent=0
    #allocation2 [shape = 'u8[8192]{0}', space=vmem, size = 0x2000, scoped, tag = 'input window, operand 0, single buffered']
    #allocation3 [shape = 's32[1]{0}', space=sflag, size = 0x4, scoped, tag = 'scoped memory for tpu_custom_call.1']
    #allocation4 [shape = 's32[1]{0}', space=sflag, size = 0x4, scoped, tag = 'scoped memory for tpu_custom_call.1']
    #allocation5 [shape = 'u8[262144]{0}', space=vmem, size = 0x40000, scoped, tag = 'input window, operand 1, single buffered']
    #allocation6 [shape = 's32[1]{0}', space=sflag, size = 0x4, scoped, tag = 'scoped memory for tpu_custom_call.1']
    #allocation7 [shape = 'u8[2048]{0}', space=vmem, size = 0x800, scoped, tag = 'output window, operand 0, single buffered']
    %7 = vsyncpa [#allocation3], 0
    %8 = vsyncpa [#allocation6], 0
    %9 = vsyncpa [#allocation4], 0
    // Predicated region
    $region2: #{tpu_custom_call.1} parent=1 // pred_check
      _
    $region3: #{tpu_custom_call.1} parent=1 // pred_check_branch
      %11 = sbr.rel (0) target = $region5
    $region4: #{tpu_custom_call.1} parent=1 // pred_region
      %s13 = ssub.s32 256, 256
      %14 = vsyncadd [#allocation3], %s13
      %s16 = sshll.u32 [#allocation2], 4
      %s17 = int_to_ptr.vmem [resolvable:$true] %s16
      %19 = dma.hbm_to_vmem [thread:$0]  %s0, 256, %s17, [#allocation3]
    $region5: #{tpu_custom_call.1} parent=1 // pred_fallthru
      _
    // Predicated region
    $region6: #{tpu_custom_call.1} parent=1 // pred_check
      _
    $region7: #{tpu_custom_call.1} parent=1 // pred_check_branch
      %21 = sbr.rel (0) target = $region9
    $region8: #{tpu_custom_call.1} parent=1 // pred_region
      %s23 = ssub.s32 8192, 8192
      %24 = vsyncadd [#allocation6], %s23
      %s25 = sshll.u32 [#allocation5], 4
      %s26 = int_to_ptr.vmem [resolvable:$true] %s25
      %31 = dma.hbm_to_vmem [thread:$0]  %s1, 8192, %s26, [#allocation6], 128, 128, 8
    $region9: #{tpu_custom_call.1} parent=1 // pred_fallthru
      _
    // Predicated region
    $region10: #{tpu_custom_call.1} parent=1 // pred_check
      _
    $region11: #{tpu_custom_call.1} parent=1 // pred_check_branch
      %33 = sbr.rel (0) target = $region13
    $region12: #{tpu_custom_call.1} parent=1 // pred_region
      %34 = dma.done [#allocation3], 256
    $region13: #{tpu_custom_call.1} parent=1 // pred_fallthru
      _
    // Predicated region
    $region14: #{tpu_custom_call.1} parent=1 // pred_check
      _
    $region15: #{tpu_custom_call.1} parent=1 // pred_check_branch
      %36 = sbr.rel (0) target = $region17
    $region16: #{tpu_custom_call.1} parent=1 // pred_region
      %37 = dma.done [#allocation6], 8192
    $region17: #{tpu_custom_call.1} parent=1 // pred_fallthru
      _
    %v38 = vld [vmem:[#allocation2] sm:$0xff]
    %v39 = vld [vmem:[#allocation2 + $0x8] sm:$0xff]
    %v40 = vld [vmem:[#allocation5] sm:$0xff]
    %v41 = vld [vmem:[#allocation5 + $0x8] sm:$0xff]
    %v42 = vld [vmem:[#allocation5 + $0x10] sm:$0xff]
    %v43 = vld [vmem:[#allocation5 + $0x18] sm:$0xff]
    %v44 = vld [vmem:[#allocation5 + $0x20] sm:$0xff]
    %v45 = vld [vmem:[#allocation5 + $0x28] sm:$0xff]
    %v46 = vld [vmem:[#allocation5 + $0x30] sm:$0xff]
    %v47 = vld [vmem:[#allocation5 + $0x38] sm:$0xff]
    %v48 = vld [vmem:[#allocation5 + $0x40] sm:$0xff]
    %v49 = vld [vmem:[#allocation5 + $0x48] sm:$0xff]
    %v50 = vld [vmem:[#allocation5 + $0x50] sm:$0xff]
    %v51 = vld [vmem:[#allocation5 + $0x58] sm:$0xff]
    %v52 = vld [vmem:[#allocation5 + $0x60] sm:$0xff]
    %v53 = vld [vmem:[#allocation5 + $0x68] sm:$0xff]
    %v54 = vld [vmem:[#allocation5 + $0x70] sm:$0xff]
    %v55 = vld [vmem:[#allocation5 + $0x78] sm:$0xff]
    %v56 = vld [vmem:[#allocation5 + $0x80] sm:$0xff]
    %v57 = vld [vmem:[#allocation5 + $0x88] sm:$0xff]
    %v58 = vld [vmem:[#allocation5 + $0x90] sm:$0xff]
    %v59 = vld [vmem:[#allocation5 + $0x98] sm:$0xff]
    %v60 = vld [vmem:[#allocation5 + $0xa0] sm:$0xff]
    %v61 = vld [vmem:[#allocation5 + $0xa8] sm:$0xff]
    %v62 = vld [vmem:[#allocation5 + $0xb0] sm:$0xff]
    %v63 = vld [vmem:[#allocation5 + $0xb8] sm:$0xff]
    %v64 = vld [vmem:[#allocation5 + $0xc0] sm:$0xff]
    %v65 = vld [vmem:[#allocation5 + $0xc8] sm:$0xff]
    %v66 = vld [vmem:[#allocation5 + $0xd0] sm:$0xff]
    %v67 = vld [vmem:[#allocation5 + $0xd8] sm:$0xff]
    %v68 = vld [vmem:[#allocation5 + $0xe0] sm:$0xff]
    %v69 = vld [vmem:[#allocation5 + $0xe8] sm:$0xff]
    %v70 = vld [vmem:[#allocation5 + $0xf0] sm:$0xff]
    %v71 = vld [vmem:[#allocation5 + $0xf8] sm:$0xff]
    %v72 = vld [vmem:[#allocation5 + $0x100] sm:$0xff]
    %v73 = vld [vmem:[#allocation5 + $0x108] sm:$0xff]
    %v74 = vld [vmem:[#allocation5 + $0x110] sm:$0xff]
    %v75 = vld [vmem:[#allocation5 + $0x118] sm:$0xff]
    %v76 = vld [vmem:[#allocation5 + $0x120] sm:$0xff]
    %v77 = vld [vmem:[#allocation5 + $0x128] sm:$0xff]
    %v78 = vld [vmem:[#allocation5 + $0x130] sm:$0xff]
    %v79 = vld [vmem:[#allocation5 + $0x138] sm:$0xff]
    %v80 = vld [vmem:[#allocation5 + $0x140] sm:$0xff]
    %v81 = vld [vmem:[#allocation5 + $0x148] sm:$0xff]
    %v82 = vld [vmem:[#allocation5 + $0x150] sm:$0xff]
    %v83 = vld [vmem:[#allocation5 + $0x158] sm:$0xff]
    %v84 = vld [vmem:[#allocation5 + $0x160] sm:$0xff]
    %v85 = vld [vmem:[#allocation5 + $0x168] sm:$0xff]
    %v86 = vld [vmem:[#allocation5 + $0x170] sm:$0xff]
    %v87 = vld [vmem:[#allocation5 + $0x178] sm:$0xff]
    %v88 = vld [vmem:[#allocation5 + $0x180] sm:$0xff]
    %v89 = vld [vmem:[#allocation5 + $0x188] sm:$0xff]
    %v90 = vld [vmem:[#allocation5 + $0x190] sm:$0xff]
    %v91 = vld [vmem:[#allocation5 + $0x198] sm:$0xff]
    %v92 = vld [vmem:[#allocation5 + $0x1a0] sm:$0xff]
    %v93 = vld [vmem:[#allocation5 + $0x1a8] sm:$0xff]
    %v94 = vld [vmem:[#allocation5 + $0x1b0] sm:$0xff]
    %v95 = vld [vmem:[#allocation5 + $0x1b8] sm:$0xff]
    %v96 = vld [vmem:[#allocation5 + $0x1c0] sm:$0xff]
    %v97 = vld [vmem:[#allocation5 + $0x1c8] sm:$0xff]
    %v98 = vld [vmem:[#allocation5 + $0x1d0] sm:$0xff]
    %v99 = vld [vmem:[#allocation5 + $0x1d8] sm:$0xff]
    %v100 = vld [vmem:[#allocation5 + $0x1e0] sm:$0xff]
    %v101 = vld [vmem:[#allocation5 + $0x1e8] sm:$0xff]
    %v102 = vld [vmem:[#allocation5 + $0x1f0] sm:$0xff]
    %v103 = vld [vmem:[#allocation5 + $0x1f8] sm:$0xff]
    %v106 = vcombine.high %v38, %v38
    %v107 = vcombine.high %v39, %v39
    %110 = vmatprep.subr.mxu0 0.0
    %111 = vmatpush1.msra.mxu0 %v55
    %112 = vmatprep.subr.mxu0 0.0
    %113 = vmatpush1.msra.mxu0 %v54
    %114 = vmatprep.subr.mxu0 0.0
    %115 = vmatpush1.msra.mxu0 %v53
    %116 = vmatprep.subr.mxu0 0.0
    %117 = vmatpush1.msra.mxu0 %v52
    %118 = vmatprep.subr.mxu0 0.0
    %119 = vmatpush1.msra.mxu0 %v51
    %120 = vmatprep.subr.mxu0 0.0
    %121 = vmatpush1.msra.mxu0 %v50
    %122 = vmatprep.subr.mxu0 0.0
    %123 = vmatpush1.msra.mxu0 %v49
    %124 = vmatprep.subr.mxu0 0.0
    %125 = vmatpush1.msra.mxu0 %v48
    %126 = vmatprep.subr.mxu0 0.0
    %127 = vmatpush1.msra.mxu0 %v47
    %128 = vmatprep.subr.mxu0 0.0
    %129 = vmatpush1.msra.mxu0 %v46
    %130 = vmatprep.subr.mxu0 0.0
    %131 = vmatpush1.msra.mxu0 %v45
    %132 = vmatprep.subr.mxu0 0.0
    %133 = vmatpush1.msra.mxu0 %v44
    %134 = vmatprep.subr.mxu0 0.0
    %135 = vmatpush1.msra.mxu0 %v43
    %136 = vmatprep.subr.mxu0 0.0
    %137 = vmatpush1.msra.mxu0 %v42
    %138 = vmatprep.subr.mxu0 0.0
    %139 = vmatpush1.msra.mxu0 %v41
    %140 = vmatprep.subr.mxu0 0.0
    %141 = vmatpush1.msra.mxu0 %v40
    %142 = vmatprep.subr.mxu0 0.0
    %143 = vmatpush2.msra.mxu0 %v71
    %144 = vmatprep.subr.mxu0 0.0
    %145 = vmatpush2.msra.mxu0 %v70
    %146 = vmatprep.subr.mxu0 0.0
    %147 = vmatpush2.msra.mxu0 %v69
    %148 = vmatprep.subr.mxu0 0.0
    %149 = vmatpush2.msra.mxu0 %v68
    %150 = vmatprep.subr.mxu0 0.0
    %151 = vmatpush2.msra.mxu0 %v67
    %152 = vmatprep.subr.mxu0 0.0
    %153 = vmatpush2.msra.mxu0 %v66
    %154 = vmatprep.subr.mxu0 0.0
    %155 = vmatpush2.msra.mxu0 %v65
    %156 = vmatprep.subr.mxu0 0.0
    %157 = vmatpush2.msra.mxu0 %v64
    %158 = vmatprep.subr.mxu0 0.0
    %159 = vmatpush2.msra.mxu0 %v63
    %160 = vmatprep.subr.mxu0 0.0
    %161 = vmatpush2.msra.mxu0 %v62
    %162 = vmatprep.subr.mxu0 0.0
    %163 = vmatpush2.msra.mxu0 %v61
    %164 = vmatprep.subr.mxu0 0.0
    %165 = vmatpush2.msra.mxu0 %v60
    %166 = vmatprep.subr.mxu0 0.0
    %167 = vmatpush2.msra.mxu0 %v59
    %168 = vmatprep.subr.mxu0 0.0
    %169 = vmatpush2.msra.mxu0 %v58
    %170 = vmatprep.subr.mxu0 0.0
    %171 = vmatpush2.msra.mxu0 %v57
    %172 = vmatprep.subr.mxu0 0.0
    %173 = vmatpush2.msra.mxu0 %v56
    %174 = vmatprep.mubr.f32.mxu0 %v106
    %175 = vmatmul.mubr.f32.gmra.mxu0 %v38
    %v176 = vpop.f32.mrf.mxu0
    %v177 = vadd.f32 0.0, %v176
    %v178 = vpop.f32.mrf.mxu0
    %179 = vdwg.mxu0
    %180 = vmatprep.subr.mxu0 0.0
    %181 = vmatpush1.msra.mxu0 %v87
    %182 = vmatprep.subr.mxu0 0.0
    %183 = vmatpush1.msra.mxu0 %v86
    %184 = vmatprep.subr.mxu0 0.0
    %185 = vmatpush1.msra.mxu0 %v85
    %186 = vmatprep.subr.mxu0 0.0
    %187 = vmatpush1.msra.mxu0 %v84
    %188 = vmatprep.subr.mxu0 0.0
    %189 = vmatpush1.msra.mxu0 %v83
    %190 = vmatprep.subr.mxu0 0.0
    %191 = vmatpush1.msra.mxu0 %v82
    %192 = vmatprep.subr.mxu0 0.0
    %193 = vmatpush1.msra.mxu0 %v81
    %194 = vmatprep.subr.mxu0 0.0
    %195 = vmatpush1.msra.mxu0 %v80
    %196 = vmatprep.subr.mxu0 0.0
    %197 = vmatpush1.msra.mxu0 %v79
    %198 = vmatprep.subr.mxu0 0.0
    %199 = vmatpush1.msra.mxu0 %v78
    %200 = vmatprep.subr.mxu0 0.0
    %201 = vmatpush1.msra.mxu0 %v77
    %202 = vmatprep.subr.mxu0 0.0
    %203 = vmatpush1.msra.mxu0 %v76
    %204 = vmatprep.subr.mxu0 0.0
    %205 = vmatpush1.msra.mxu0 %v75
    %206 = vmatprep.subr.mxu0 0.0
    %207 = vmatpush1.msra.mxu0 %v74
    %208 = vmatprep.subr.mxu0 0.0
    %209 = vmatpush1.msra.mxu0 %v73
    %210 = vmatprep.subr.mxu0 0.0
    %211 = vmatpush1.msra.mxu0 %v72
    %212 = vmatprep.subr.mxu0 0.0
    %213 = vmatpush2.msra.mxu0 %v103
    %214 = vmatprep.subr.mxu0 0.0
    %215 = vmatpush2.msra.mxu0 %v102
    %216 = vmatprep.subr.mxu0 0.0
    %217 = vmatpush2.msra.mxu0 %v101
    %218 = vmatprep.subr.mxu0 0.0
    %219 = vmatpush2.msra.mxu0 %v100
    %220 = vmatprep.subr.mxu0 0.0
    %221 = vmatpush2.msra.mxu0 %v99
    %222 = vmatprep.subr.mxu0 0.0
    %223 = vmatpush2.msra.mxu0 %v98
    %224 = vmatprep.subr.mxu0 0.0
    %225 = vmatpush2.msra.mxu0 %v97
    %226 = vmatprep.subr.mxu0 0.0
    %227 = vmatpush2.msra.mxu0 %v96
    %228 = vmatprep.subr.mxu0 0.0
    %229 = vmatpush2.msra.mxu0 %v95
    %230 = vmatprep.subr.mxu0 0.0
    %231 = vmatpush2.msra.mxu0 %v94
    %232 = vmatprep.subr.mxu0 0.0
    %233 = vmatpush2.msra.mxu0 %v93
    %234 = vmatprep.subr.mxu0 0.0
    %235 = vmatpush2.msra.mxu0 %v92
    %236 = vmatprep.subr.mxu0 0.0
    %237 = vmatpush2.msra.mxu0 %v91
    %238 = vmatprep.subr.mxu0 0.0
    %239 = vmatpush2.msra.mxu0 %v90
    %240 = vmatprep.subr.mxu0 0.0
    %241 = vmatpush2.msra.mxu0 %v89
    %242 = vmatprep.subr.mxu0 0.0
    %243 = vmatpush2.msra.mxu0 %v88
    %244 = vmatprep.mubr.f32.mxu0 %v107
    %245 = vmatmul.mubr.f32.gmra.mxu0 %v39
    %v246 = vpop.f32.mrf.mxu0
    %v247 = vadd.f32 %v177, %v246
    %v248 = vpop.f32.mrf.mxu0
    %249 = vdwg.mxu0
    %250 = vst [vmem:[#allocation7] sm:$0xf] %v247
    // Predicated region
    $region18: #{tpu_custom_call.1} parent=1 // pred_check
      _
    $region19: #{tpu_custom_call.1} parent=1 // pred_check_branch
      %252 = sbr.rel (0) target = $region21
    $region20: #{tpu_custom_call.1} parent=1 // pred_region
      %s254 = ssub.s32 64, 64
      %255 = vsyncadd [#allocation4], %s254
      %s257 = sshll.u32 [#allocation7], 4
      %s258 = int_to_ptr.vmem [resolvable:$true] %s257
      %260 = dma.vmem_to_hbm [thread:$0]  %s258, 64, %s2, [#allocation4]
    $region21: #{tpu_custom_call.1} parent=1 // pred_fallthru
      _
    // Predicated region
    $region22: #{tpu_custom_call.1} parent=1 // pred_check
      _
    $region23: #{tpu_custom_call.1} parent=1 // pred_check_branch
      %262 = sbr.rel (0) target = $region25
    $region24: #{tpu_custom_call.1} parent=1 // pred_region
      %263 = dma.done [#allocation4], 64
    $region25: #{tpu_custom_call.1} parent=1 // pred_fallthru
      _
    %264 = vsyncpa [#allocation3], 1
    %265 = vsyncpa [#allocation6], 1
    %266 = vsyncpa [#allocation4], 1

</llo_original>
